<compile_context>
chip_gen: v7x
topology: tpu7x:2x2x1
jax: 0.10.0
libtpu: 0.0.40
codegen_flags: <defaults>
</compile_context>

<pallas_src>
import functools

import jax
import jax.numpy as jnp
import numpy as np
from jax.experimental import pallas as pl
from jax.experimental.pallas import tpu as pltpu


def _dice_sq_kernel(x_ref, y_ref, inter_ref, denom_ref,
                    inter_acc, denom_acc, *, apply_softmax):
    """One (batch b, N-tile k) grid step.

    x_ref:     (1, C, TILE_N) network output tile (native dtype)
    y_ref:     (1, 1, TILE_N) integer label tile
    inter_ref: (1, C, 1)      sum_n x * onehot          (resident accumulator)
    denom_ref: (1, C, 1)      sum_n x^2 + onehot^2      (resident accumulator)
    inter_acc, denom_acc: (C, TILE_N) f32 VMEM scratch (lane-wise partials).
    """
    k = pl.program_id(1)
    n_k = pl.num_programs(1)

    @pl.when(k == 0)
    def _init():
        inter_acc[...] = jnp.zeros_like(inter_acc)
        denom_acc[...] = jnp.zeros_like(denom_acc)

    xb = x_ref[0].astype(jnp.float32)            # (C, TILE_N)
    labels = y_ref[0].astype(jnp.int32)          # (1, TILE_N)
    C, tn = xb.shape

    if apply_softmax:
        # Optional apply_nonlin == softmax over the class (sublane) axis.
        m = jnp.max(xb, axis=0, keepdims=True)
        e = jnp.exp(xb - m)
        s = jnp.sum(e, axis=0, keepdims=True)
        xb = e * pl.reciprocal(s, approx=False)

    cls_iota = jax.lax.broadcasted_iota(jnp.int32, (C, tn), 0)
    mask = cls_iota == labels                    # (C, TILE_N) bool, no f32 onehot

    # onehot is 0/1  =>  onehot^2 == onehot, so:
    #   intersect   += sum_n where(mask, x, 0)
    #   denominator += sum_n x*x  +  count(mask)
    inter_acc[...] += jnp.where(mask, xb, 0.0)
    denom_acc[...] += xb * xb + mask.astype(jnp.float32)

    @pl.when(k == n_k - 1)
    def _finalize():
        # Single cross-lane (XLU) reduction per batch element.
        inter_ref[...] = jnp.sum(inter_acc[...], axis=-1, keepdims=True)[None]
        denom_ref[...] = jnp.sum(denom_acc[...], axis=-1, keepdims=True)[None]


def _pick_tile_n(n, target):
    """Largest multiple of 128 <= target that divides n, else n (full block)."""
    if n <= target:
        return n
    t = (target // 128) * 128
    while t >= 128:
        if n % t == 0:
            return t
        t -= 128
    return n


def soft_dice_loss_squared(x, y, *, smooth=1.0, do_bg=True, batch_dice=False,
                           apply_softmax=False, tile_n_target=16384):
    """Forward of SoftDiceLossSquared.

    x: (B, C, *spatial) network output (native dtype, e.g. bf16 or f32).
    y: (B, 1, *spatial) or (B, *spatial) integer label map.
    apply_softmax=False matches the module default apply_nonlin=None.
    tile_n_target: ~16K lanes keeps VMEM use in the low MiB even for large C;
    safe on v7x (64 MiB) and v5e/v6e (128 MiB).
    """
    B, C = x.shape[0], x.shape[1]
    spatial = x.shape[2:]
    N = int(np.prod(spatial))

    if y.ndim == x.ndim and y.shape[1] == C:
        # TODO(synk): the "y already one-hot / soft-label" branch of
        # SoftDiceLossSquared.forward is not implemented in the kernel.
        raise NotImplementedError("soft / one-hot targets not supported")

    logits = x.reshape(B, C, N)          # native dtype; widened inside kernel
    labels = y.reshape(B, 1, N)          # native integer dtype

    TILE_N = _pick_tile_n(N, tile_n_target)
    assert N % TILE_N == 0
    grid = (B, N // TILE_N)

    kernel = functools.partial(_dice_sq_kernel, apply_softmax=apply_softmax)

    inter, denom = pl.pallas_call(
        kernel,
        out_shape=(
            jax.ShapeDtypeStruct((B, C, 1), jnp.float32),
            jax.ShapeDtypeStruct((B, C, 1), jnp.float32),
        ),
        grid_spec=pltpu.PrefetchScalarGridSpec(
            num_scalar_prefetch=0,
            grid=grid,
            in_specs=[
                pl.BlockSpec((1, C, TILE_N), lambda b, k: (b, 0, k)),
                pl.BlockSpec((1, 1, TILE_N), lambda b, k: (b, 0, k)),
            ],
            out_specs=(
                pl.BlockSpec((1, C, 1), lambda b, k: (b, 0, 0)),
                pl.BlockSpec((1, C, 1), lambda b, k: (b, 0, 0)),
            ),
            scratch_shapes=[
                pltpu.VMEM((C, TILE_N), jnp.float32),
                pltpu.VMEM((C, TILE_N), jnp.float32),
            ],
        ),
        compiler_params=pltpu.CompilerParams(
            dimension_semantics=("parallel", "arbitrary"),
            vmem_limit_bytes=32 * 1024 * 1024,
        ),
    )(logits, labels)

    intersect = inter.reshape(B, C)
    denominator = denom.reshape(B, C)

    # ----- SoftDiceLossSquared epilogue (cheap, plain JAX) -----
    if batch_dice:
        intersect = jnp.sum(intersect, axis=0)       # axes = [0, 2, 3, ...]
        denominator = jnp.sum(denominator, axis=0)
    intersect = intersect + smooth
    denominator = denominator + smooth
    dc = 2.0 * intersect / denominator
    if not do_bg:
        dc = dc[1:] if batch_dice else dc[:, 1:]
    return -jnp.mean(dc)


def _reference(x, y, *, smooth=1.0, do_bg=True, batch_dice=False,
               apply_softmax=False):
    """Pure-JAX mirror of the PyTorch forward, for correctness checking."""
    C = x.shape[1]
    xf = x.astype(jnp.float32)
    if apply_softmax:
        xf = jax.nn.softmax(xf, axis=1)
    onehot = jax.nn.one_hot(y[:, 0], C, axis=1, dtype=jnp.float32)  # (B,C,H,W)
    axes = (0, 2, 3) if batch_dice else (2, 3)
    intersect = jnp.sum(xf * onehot, axis=axes) + smooth
    denominator = jnp.sum(xf ** 2 + onehot ** 2, axis=axes) + smooth
    dc = 2.0 * intersect / denominator
    if not do_bg:
        dc = dc[1:] if batch_dice else dc[:, 1:]
    return -jnp.mean(dc)


if __name__ == "__main__":
    key = jax.random.PRNGKey(0)
    B, C, H, W = 2, 4, 16, 16
    k1, k2 = jax.random.split(key)
    x = jax.random.normal(k1, (B, C, H, W), dtype=jnp.float32)
    y = jax.random.randint(k2, (B, 1, H, W), 0, C, dtype=jnp.int32)

    loss = soft_dice_loss_squared(x, y, smooth=1.0, do_bg=True,
                                  batch_dice=False, apply_softmax=False)
    loss = jax.block_until_ready(loss)

    ref = jax.block_until_ready(
        _reference(x, y, smooth=1.0, do_bg=True, batch_dice=False,
                   apply_softmax=False))
    np.testing.assert_allclose(np.asarray(loss), np.asarray(ref),
                               rtol=1e-5, atol=1e-5)
    print("KERNEL_OK")
</pallas_src>

<mosaic_0001>
module attributes {stable_mosaic.version = 11 : i64} {
  func.func @_dice_sq_kernel(%arg0: i32, %arg1: i32, %arg2: memref<1x4x256xf32, #tpu.memory_space<vmem>>, %arg3: memref<1x1x256xi32, #tpu.memory_space<vmem>>, %arg4: memref<1x4x1xf32, #tpu.memory_space<vmem>>, %arg5: memref<1x4x1xf32, #tpu.memory_space<vmem>>, %arg6: memref<4x256xf32, #tpu.memory_space<vmem>>, %arg7: memref<4x256xf32, #tpu.memory_space<vmem>>) attributes {dimension_semantics = [#tpu.dimension_semantics<parallel>, #tpu.dimension_semantics<arbitrary>], iteration_bounds = array<i64: 2, 1>, scalar_prefetch = 0 : i64, scratch_operands = 2 : i64, tpu.core_type = #tpu.core_type<tc>, window_params = [{transform_indices = @transform_0, window_bounds = array<i64: 1, 4, 256>}, {transform_indices = @transform_1, window_bounds = array<i64: 1, 1, 256>}, {transform_indices = @transform_2, window_bounds = array<i64: 1, 4, 1>}, {transform_indices = @transform_3, window_bounds = array<i64: 1, 4, 1>}]} {
    %c0_i32 = arith.constant 0 : i32
    %0 = arith.cmpi eq, %arg1, %c0_i32 : i32
    %1 = arith.extui %0 : i1 to i32
    %c0_i32_0 = arith.constant 0 : i32
    %2 = arith.cmpi ne, %1, %c0_i32_0 : i32
    scf.if %2 {
      %cst_16 = arith.constant 0.000000e+00 : f32
      %25 = vector.broadcast %cst_16 : f32 to vector<4x256xf32>
      %c0_17 = arith.constant 0 : index
      %c0_18 = arith.constant 0 : index
      %26 = vector.load %arg6[%c0_17, %c0_18] : memref<4x256xf32, #tpu.memory_space<vmem>>, vector<4x256xf32>
      tpu.vector_store %arg6[%c0_17, %c0_18], %25 {strides = array<i32>} : memref<4x256xf32, #tpu.memory_space<vmem>>, vector<4x256xf32>,
      %cst_19 = arith.constant 0.000000e+00 : f32
      %27 = vector.broadcast %cst_19 : f32 to vector<4x256xf32>
      %c0_20 = arith.constant 0 : index
      %c0_21 = arith.constant 0 : index
      %28 = vector.load %arg7[%c0_20, %c0_21] : memref<4x256xf32, #tpu.memory_space<vmem>>, vector<4x256xf32>
      tpu.vector_store %arg7[%c0_20, %c0_21], %27 {strides = array<i32>} : memref<4x256xf32, #tpu.memory_space<vmem>>, vector<4x256xf32>,
    } else {
    }
    %c0 = arith.constant 0 : index
    %c0_1 = arith.constant 0 : index
    %c0_2 = arith.constant 0 : index
    %3 = vector.load %arg2[%c0, %c0_1, %c0_2] : memref<1x4x256xf32, #tpu.memory_space<vmem>>, vector<1x4x256xf32>
    %4 = vector.shape_cast %3 : vector<1x4x256xf32> to vector<4x256xf32>
    %c0_3 = arith.constant 0 : index
    %c0_4 = arith.constant 0 : index
    %c0_5 = arith.constant 0 : index
    %5 = vector.load %arg3[%c0_3, %c0_4, %c0_5] : memref<1x1x256xi32, #tpu.memory_space<vmem>>, vector<1x1x256xi32>
    %6 = vector.shape_cast %5 : vector<1x1x256xi32> to vector<1x256xi32>
    %7 = tpu.iota {dimensions = array<i32: 0>} : vector<4x256xi32>
    %8 = vector.broadcast %6 : vector<1x256xi32> to vector<4x256xi32>
    %9 = arith.cmpi eq, %7, %8 : vector<4x256xi32>
    %c0_6 = arith.constant 0 : index
    %c0_7 = arith.constant 0 : index
    %10 = vector.load %arg6[%c0_6, %c0_7] : memref<4x256xf32, #tpu.memory_space<vmem>>, vector<4x256xf32>
    %cst = arith.constant 0.000000e+00 : f32
    %11 = vector.broadcast %cst : f32 to vector<4x256xf32>
    %12 = arith.select %9, %4, %11 : vector<4x256xi1>, vector<4x256xf32>
    %13 = arith.addf %10, %12 : vector<4x256xf32>
    %c0_8 = arith.constant 0 : index
    %c0_9 = arith.constant 0 : index
    %14 = vector.load %arg6[%c0_8, %c0_9] : memref<4x256xf32, #tpu.memory_space<vmem>>, vector<4x256xf32>
    tpu.vector_store %arg6[%c0_8, %c0_9], %13 {strides = array<i32>} : memref<4x256xf32, #tpu.memory_space<vmem>>, vector<4x256xf32>,
    %c0_10 = arith.constant 0 : index
    %c0_11 = arith.constant 0 : index
    %15 = vector.load %arg7[%c0_10, %c0_11] : memref<4x256xf32, #tpu.memory_space<vmem>>, vector<4x256xf32>
    %16 = arith.mulf %4, %4 : vector<4x256xf32>
    %17 = arith.extui %9 : vector<4x256xi1> to vector<4x256xi32>
    %18 = arith.sitofp %17 : vector<4x256xi32> to vector<4x256xf32>
    %19 = arith.addf %16, %18 : vector<4x256xf32>
    %20 = arith.addf %15, %19 : vector<4x256xf32>
    %c0_12 = arith.constant 0 : index
    %c0_13 = arith.constant 0 : index
    %21 = vector.load %arg7[%c0_12, %c0_13] : memref<4x256xf32, #tpu.memory_space<vmem>>, vector<4x256xf32>
    tpu.vector_store %arg7[%c0_12, %c0_13], %20 {strides = array<i32>} : memref<4x256xf32, #tpu.memory_space<vmem>>, vector<4x256xf32>,
    %c0_i32_14 = arith.constant 0 : i32
    %22 = arith.cmpi eq, %arg1, %c0_i32_14 : i32
    %23 = arith.extui %22 : i1 to i32
    %c0_i32_15 = arith.constant 0 : i32
    %24 = arith.cmpi ne, %23, %c0_i32_15 : i32
    scf.if %24 {
      %c0_16 = arith.constant 0 : index
      %c0_17 = arith.constant 0 : index
      %25 = vector.load %arg6[%c0_16, %c0_17] : memref<4x256xf32, #tpu.memory_space<vmem>>, vector<4x256xf32>
      %cst_18 = arith.constant dense<0.000000e+00> : vector<4xf32>
      %26 = vector.multi_reduction <add>, %25, %cst_18 [1] : vector<4x256xf32> to vector<4xf32>
      %27 = vector.shape_cast %26 : vector<4xf32> to vector<4x1xf32>
      %28 = vector.shape_cast %27 : vector<4x1xf32> to vector<1x4x1xf32>
      %c0_19 = arith.constant 0 : index
      %c0_20 = arith.constant 0 : index
      %c0_21 = arith.constant 0 : index
      %29 = vector.load %arg4[%c0_19, %c0_20, %c0_21] : memref<1x4x1xf32, #tpu.memory_space<vmem>>, vector<1x4x1xf32>
      tpu.vector_store %arg4[%c0_19, %c0_20, %c0_21], %28 {strides = array<i32>} : memref<1x4x1xf32, #tpu.memory_space<vmem>>, vector<1x4x1xf32>,
      %c0_22 = arith.constant 0 : index
      %c0_23 = arith.constant 0 : index
      %30 = vector.load %arg7[%c0_22, %c0_23] : memref<4x256xf32, #tpu.memory_space<vmem>>, vector<4x256xf32>
      %cst_24 = arith.constant dense<0.000000e+00> : vector<4xf32>
      %31 = vector.multi_reduction <add>, %30, %cst_24 [1] : vector<4x256xf32> to vector<4xf32>
      %32 = vector.shape_cast %31 : vector<4xf32> to vector<4x1xf32>
      %33 = vector.shape_cast %32 : vector<4x1xf32> to vector<1x4x1xf32>
      %c0_25 = arith.constant 0 : index
      %c0_26 = arith.constant 0 : index
      %c0_27 = arith.constant 0 : index
      %34 = vector.load %arg5[%c0_25, %c0_26, %c0_27] : memref<1x4x1xf32, #tpu.memory_space<vmem>>, vector<1x4x1xf32>
      tpu.vector_store %arg5[%c0_25, %c0_26, %c0_27], %33 {strides = array<i32>} : memref<1x4x1xf32, #tpu.memory_space<vmem>>, vector<1x4x1xf32>,
    } else {
    }
    return
  }
  func.func @transform_0(%arg0: i32, %arg1: i32) -> (i32, i32, i32) {
    %c0_i32 = arith.constant 0 : i32
    %c0_i32_0 = arith.constant 0 : i32
    return %arg0, %c0_i32, %arg1 : i32, i32, i32
  }
  func.func @transform_1(%arg0: i32, %arg1: i32) -> (i32, i32, i32) {
    %c0_i32 = arith.constant 0 : i32
    %c0_i32_0 = arith.constant 0 : i32
    return %arg0, %c0_i32, %arg1 : i32, i32, i32
  }
  func.func @transform_2(%arg0: i32, %arg1: i32) -> (i32, i32, i32) {
    %c0_i32 = arith.constant 0 : i32
    %c0_i32_0 = arith.constant 0 : i32
    %c0_i32_1 = arith.constant 0 : i32
    return %arg0, %c0_i32, %c0_i32_0 : i32, i32, i32
  }
  func.func @transform_3(%arg0: i32, %arg1: i32) -> (i32, i32, i32) {
    %c0_i32 = arith.constant 0 : i32
    %c0_i32_0 = arith.constant 0 : i32
    %c0_i32_1 = arith.constant 0 : i32
    return %arg0, %c0_i32, %c0_i32_0 : i32, i32, i32
  }
}

</mosaic_0001>

<llo_original>
// kernel: tpu_custom_call.1
$region0: #{tpu_custom_call.1}
  #allocation0 [shape = 'u32[]', space=smem, size = 0x4, offset = 0x4, fixed_abs, tag = 'smem constant byte address 0x4 - core index']
  #allocation1 [shape = 'u32[144,128]{1,0:T(1,128)}', space=vmem, size = 0x12000, scoped, tag = 'internal scratch']
  #allocation2 [shape = 'f32[4,256]{1,0:T(4,128)}', space=vmem, size = 0x1000, scoped, tag = 'scratch operand']
  #allocation3 [shape = 'f32[4,256]{1,0:T(4,128)}', space=vmem, size = 0x1000, scoped, tag = 'scratch operand']
  %s0 = inlined_call_operand.hbm [shape: f32[2,4,256], index: 0, kind: input, shape index: {}]
  %s1 = inlined_call_operand.hbm [shape: s32[2,1,256], index: 1, kind: input, shape index: {}]
  %s2 = inlined_call_operand.vmem [shape: f32[2,4,1], index: 2, kind: output, shape index: {0}]
  %s3 = inlined_call_operand.vmem [shape: f32[2,4,1], index: 3, kind: output, shape index: {1}]
  %4 = xla_tuple %s2, %s3
  %s5 = sld [smem:[#allocation0]]
  $region65: #{tpu_custom_call.1} parent=0
    _
  %s7 = ssub.s32 1, %s5
  %s8 = scalar_select 0, %s7, %s5
  $region1: #{tpu_custom_call.1} parent=0
    #allocation4 [shape = 'u8[8192]{0}', space=vmem, size = 0x2000, scoped, tag = 'input window, operand 0']
    #allocation5 [shape = 's32[2]{0}', space=sflag, size = 0x8, scoped, tag = 'scoped memory for tpu_custom_call.1']
    #allocation6 [shape = 'u8[2048]{0}', space=vmem, size = 0x800, scoped, tag = 'input window, operand 1']
    #allocation7 [shape = 's32[2]{0}', space=sflag, size = 0x8, scoped, tag = 'scoped memory for tpu_custom_call.1']
    %9 = vsyncpa [#allocation5], 0
    %s10 = scalar_lea.sflag [#allocation5], 1
    %11 = vsyncpa %s10, 0
    %12 = vsyncpa [#allocation7], 0
    %s13 = scalar_lea.sflag [#allocation7], 1
    %14 = vsyncpa %s13, 0
    loop: start=0, step=1, limit=4
    $region2: #{tpu_custom_call.1} parent=1 // loop_pre_header
      _
    $region3: #{tpu_custom_call.1} parent=1 // loop_header
      %s16 = sphi 0, %s20
      %p17 = scmp.ge.s32.totalorder %s16, 4
      %s23 = sphi 0, %s35
      %s24 = sphi 0, %s31
      %s25 = sphi 0, %s23
      %s26 = sphi 0, %s24
      %s27 = sphi 0, %s25
      %s28 = sphi 0, %s26
      %s40 = sphi 0, %s42
      %s43 = sphi 0, %s40
      %s44 = sphi 0, %s43
      %s60 = sphi 0, %s44
      %s68 = sphi 0, %s70
      %s71 = sphi 0, %s68
      %s72 = sphi 0, %s71
      %s88 = sphi 0, %s72
      %s94 = sphi 0, %s96
      %s97 = sphi 0, %s94
      %s98 = sphi 0, %s97
      %s114 = sphi 0, %s98
      %s120 = sphi 0, %s122
      %s123 = sphi 0, %s120
      %s124 = sphi 0, %s123
      %s140 = sphi 0, %s124
    $region4: #{tpu_custom_call.1} parent=1 // loop_header_branch
      %19 = sbr.rel (%p17) target = $region8
    $region5: #{tpu_custom_call.1} parent=1 // loop_body
      %s21 = ssub.s32 %s16, 1
      %s22 = ssub.s32 %s16, 2
      %s29 = sadd.s32 1, %s24
      %p30 = scmp.ge.s32.totalorder %s29, 1
      %s31 = scalar_select %p30, 0, %s29
      %s32 = sadd.s32 1, %s23
      %s33 = scalar_select %p30, %s32, %s23
      %p34 = scmp.ge.s32.totalorder %s33, 2
      %s35 = scalar_select %p34, 0, %s33
      %s36 = ssub.s32 %s23, %s35
      %s37 = ssub.s32 %s24, %s31
      %s38 = sor.u32 %s36, %s37
      %p39 = scmp.eq.s32.totalorder %s38, 0
      %s41 = sadd.s32 %s40, 1
      %s42 = scalar_select %p39, %s40, %s41
      %p45 = pneg %p39
      %p46 = scmp.eq.s32.totalorder %s16, 1
      %p47 = por %p45, %p46
      %p48 = scmp.ne.s32.totalorder %s40, %s43
      %p49 = scmp.eq.s32.totalorder %s16, 0
      %p50 = por %p48, %p49
      %p51 = scmp.ne.s32.totalorder %s40, %s43
      %p52 = scmp.eq.s32.totalorder %s21, 1
      %p53 = por %p51, %p52
      %p54 = scmp.ne.s32.totalorder %s43, %s44
      %p55 = scmp.eq.s32.totalorder %s21, 0
      %p56 = por %p54, %p55
      %p57 = scmp.ne.s32.totalorder %s43, %s44
      %p58 = scmp.eq.s32.totalorder %s22, 1
      %p59 = por %p57, %p58
      %p61 = scmp.ne.s32.totalorder %s44, %s60
      %p62 = scmp.eq.s32.totalorder %s22, 0
      %p63 = por %p61, %p62
      %s64 = ssub.s32 %s23, %s35
      %s65 = ssub.s32 %s24, %s31
      %s66 = sor.u32 %s64, %s65
      %p67 = scmp.eq.s32.totalorder %s66, 0
      %s69 = sadd.s32 %s68, 1
      %s70 = scalar_select %p67, %s68, %s69
      %p73 = pneg %p67
      %p74 = scmp.eq.s32.totalorder %s16, 1
      %p75 = por %p73, %p74
      %p76 = scmp.ne.s32.totalorder %s68, %s71
      %p77 = scmp.eq.s32.totalorder %s16, 0
      %p78 = por %p76, %p77
      %p79 = scmp.ne.s32.totalorder %s68, %s71
      %p80 = scmp.eq.s32.totalorder %s21, 1
      %p81 = por %p79, %p80
      %p82 = scmp.ne.s32.totalorder %s71, %s72
      %p83 = scmp.eq.s32.totalorder %s21, 0
      %p84 = por %p82, %p83
      %p85 = scmp.ne.s32.totalorder %s71, %s72
      %p86 = scmp.eq.s32.totalorder %s22, 1
      %p87 = por %p85, %p86
      %p89 = scmp.ne.s32.totalorder %s72, %s88
      %p90 = scmp.eq.s32.totalorder %s22, 0
      %p91 = por %p89, %p90
      %s92 = ssub.s32 %s23, %s35
      %p93 = scmp.eq.s32.totalorder %s92, 0
      %s95 = sadd.s32 %s94, 1
      %s96 = scalar_select %p93, %s94, %s95
      %p99 = pneg %p93
      %p100 = scmp.eq.s32.totalorder %s16, 1
      %p101 = por %p99, %p100
      %p102 = scmp.ne.s32.totalorder %s94, %s97
      %p103 = scmp.eq.s32.totalorder %s16, 0
      %p104 = por %p102, %p103
      %p105 = scmp.ne.s32.totalorder %s94, %s97
      %p106 = scmp.eq.s32.totalorder %s21, 1
      %p107 = por %p105, %p106
      %p108 = scmp.ne.s32.totalorder %s97, %s98
      %p109 = scmp.eq.s32.totalorder %s21, 0
      %p110 = por %p108, %p109
      %p111 = scmp.ne.s32.totalorder %s97, %s98
      %p112 = scmp.eq.s32.totalorder %s22, 1
      %p113 = por %p111, %p112
      %p115 = scmp.ne.s32.totalorder %s98, %s114
      %p116 = scmp.eq.s32.totalorder %s22, 0
      %p117 = por %p115, %p116
      %s118 = ssub.s32 %s23, %s35
      %p119 = scmp.eq.s32.totalorder %s118, 0
      %s121 = sadd.s32 %s120, 1
      %s122 = scalar_select %p119, %s120, %s121
      %p125 = pneg %p119
      %p126 = scmp.eq.s32.totalorder %s16, 1
      %p127 = por %p125, %p126
      %p128 = scmp.ne.s32.totalorder %s120, %s123
      %p129 = scmp.eq.s32.totalorder %s16, 0
      %p130 = por %p128, %p129
      %p131 = scmp.ne.s32.totalorder %s120, %s123
      %p132 = scmp.eq.s32.totalorder %s21, 1
      %p133 = por %p131, %p132
      %p134 = scmp.ne.s32.totalorder %s123, %s124
      %p135 = scmp.eq.s32.totalorder %s21, 0
      %p136 = por %p134, %p135
      %p137 = scmp.ne.s32.totalorder %s123, %s124
      %p138 = scmp.eq.s32.totalorder %s22, 1
      %p139 = por %p137, %p138
      %p141 = scmp.ne.s32.totalorder %s124, %s140
      %p142 = scmp.eq.s32.totalorder %s22, 0
      %p143 = por %p141, %p142
      %p144 = scmp.le.s32.totalorder 1, %s16
      %p145 = scmp.lt.s32.totalorder %s16, 3
      %p146 = pnand %p144, %p145
      %p147 = pneg %p146
      // Predicated region
      $region9: #{tpu_custom_call.1} parent=5 // pred_check
        _
      $region10: #{tpu_custom_call.1} parent=5 // pred_check_branch
        %149 = sbr.rel (%p146) target = $region12
      $region11: #{tpu_custom_call.1} parent=5 // pred_region
        %s150 = ssub.s32 %s16, 1
      $region12: #{tpu_custom_call.1} parent=5 // pred_fallthru
        _
      %p151 = scmp.lt.s32.totalorder %s16, 2
      // Predicated region
      $region13: #{tpu_custom_call.1} parent=5 // pred_check
        %p152 = pneg %p151
      $region14: #{tpu_custom_call.1} parent=5 // pred_check_branch
        %154 = sbr.rel (%p152) target = $region16
      $region15: #{tpu_custom_call.1} parent=5 // pred_region
        // Predicated region
        $region17: #{tpu_custom_call.1} parent=15 // pred_check
          %p155 = pneg %p50
        $region18: #{tpu_custom_call.1} parent=15 // pred_check_branch
          %157 = sbr.rel (%p155) target = $region20
        $region19: #{tpu_custom_call.1} parent=15 // pred_region
          %s158 = sand.u32 %s40, 1
          %s159 = scalar_lea.sflag [#allocation5], %s158
          %s160 = sand.u32 %s40, 1
          %s161 = smul.addr %s160, 8
          %s162 = scalar_lea.vmem [#allocation4], %s161
          %s163 = smul.u32 2, %s24
          %s165 = ssub.s32 128, 128
          %166 = vsyncadd %s159, %s165
          %s167 = smul.addr %s23, 2
          %s168 = sadd.s32 %s163, %s167
          %s169 = smul.addr %s168, 64
          %s170 = scalar_lea.hbm %s0, %s169
          %s172 = sshll.u32 %s162, 4
          %s173 = int_to_ptr.vmem [resolvable:$true] %s172
          %175 = dma.hbm_to_vmem [thread:$0]  %s170, 128, %s173, %s159
        $region20: #{tpu_custom_call.1} parent=15 // pred_fallthru
          _
        // Predicated region
        $region21: #{tpu_custom_call.1} parent=15 // pred_check
          %p176 = pneg %p78
        $region22: #{tpu_custom_call.1} parent=15 // pred_check_branch
          %178 = sbr.rel (%p176) target = $region24
        $region23: #{tpu_custom_call.1} parent=15 // pred_region
          %s179 = sand.u32 %s68, 1
          %s180 = scalar_lea.sflag [#allocation7], %s179
          %s181 = sand.u32 %s68, 1
          %s182 = smul.addr %s181, 2
          %s183 = scalar_lea.vmem [#allocation6], %s182
          %s184 = smul.u32 2, %s24
          %s186 = ssub.s32 32, 32
          %187 = vsyncadd %s180, %s186
          %s188 = smul.addr %s23, 2
          %s189 = sadd.s32 %s184, %s188
          %s190 = smul.addr %s189, 16
          %s191 = scalar_lea.hbm %s1, %s190
          %s193 = sshll.u32 %s183, 4
          %s194 = int_to_ptr.vmem [resolvable:$true] %s193
          %196 = dma.hbm_to_vmem [thread:$0]  %s191, 32, %s194, %s180
        $region24: #{tpu_custom_call.1} parent=15 // pred_fallthru
          _
      $region16: #{tpu_custom_call.1} parent=5 // pred_fallthru
        _
      %p197 = scmp.le.s32.totalorder 1, %s16
      %p198 = scmp.lt.s32.totalorder %s16, 3
      %p199 = pnand %p197, %p198
      %p200 = pneg %p199
      // Predicated region
      $region25: #{tpu_custom_call.1} parent=5 // pred_check
        _
      $region26: #{tpu_custom_call.1} parent=5 // pred_check_branch
        %202 = sbr.rel (%p199) target = $region28
      $region27: #{tpu_custom_call.1} parent=5 // pred_region
        %s203 = ssub.s32 %s16, 1
        %s204 = sand.u32 %s43, 1
        %s205 = scalar_lea.sflag [#allocation5], %s204
        %s206 = sand.u32 %s43, 1
        %s207 = smul.addr %s206, 8
        %s208 = scalar_lea.vmem [#allocation4], %s207
        // Predicated region
        $region29: #{tpu_custom_call.1} parent=27 // pred_check
          %p209 = pneg %p56
        $region30: #{tpu_custom_call.1} parent=27 // pred_check_branch
          %211 = sbr.rel (%p209) target = $region32
        $region31: #{tpu_custom_call.1} parent=27 // pred_region
          %212 = dma.done %s205, 128
        $region32: #{tpu_custom_call.1} parent=27 // pred_fallthru
          _
        %s213 = sand.u32 %s71, 1
        %s214 = scalar_lea.sflag [#allocation7], %s213
        %s215 = sand.u32 %s71, 1
        %s216 = smul.addr %s215, 2
        %s217 = scalar_lea.vmem [#allocation6], %s216
        // Predicated region
        $region33: #{tpu_custom_call.1} parent=27 // pred_check
          %p218 = pneg %p84
        $region34: #{tpu_custom_call.1} parent=27 // pred_check_branch
          %220 = sbr.rel (%p218) target = $region36
        $region35: #{tpu_custom_call.1} parent=27 // pred_region
          %221 = dma.done %s214, 32
        $region36: #{tpu_custom_call.1} parent=27 // pred_fallthru
          _
        %s222 = sand.u32 %s43, 1
        %s223 = scalar_lea.sflag [#allocation5], %s222
        %s224 = sand.u32 %s43, 1
        %s225 = smul.addr %s224, 8
        %s226 = scalar_lea.vmem [#allocation4], %s225
        %p227 = pneg %p56
        %p228 = pneg %p53
        %s229 = sand.u32 %s71, 1
        %s230 = scalar_lea.sflag [#allocation7], %s229
        %s231 = sand.u32 %s71, 1
        %s232 = smul.addr %s231, 2
        %s233 = scalar_lea.vmem [#allocation6], %s232
        %p234 = pneg %p84
        %p235 = pneg %p81
        %p236 = pneg %p110
        %p237 = pneg %p107
        %p238 = scmp.lt.s32.totalorder %s25, 1
        %s239 = scalar_select %p238, %s25, 1
        %s240 = smul.addr %s239, 4
        %s241 = scalar_lea.vmem %s2, %s240
        %p242 = pneg %p136
        %p243 = pneg %p133
        %p244 = scmp.lt.s32.totalorder %s25, 1
        %s245 = scalar_select %p244, %s25, 1
        %s246 = smul.addr %s245, 4
        %s247 = scalar_lea.vmem %s3, %s246
        %s248 = smul.u32 2, %s26
        %s249 = smul.u32 2, %s26
        %p250 = scmp.lt.s32.totalorder %s25, 1
        %s251 = scalar_select %p250, %s25, 1
        %s252 = smul.addr %s251, 4
        %s253 = scalar_lea.vmem %s2, %s252
        %p254 = scmp.lt.s32.totalorder %s25, 1
        %s255 = scalar_select %p254, %s25, 1
        %s256 = smul.addr %s255, 4
        %s257 = scalar_lea.vmem %s3, %s256
        %p258 = scmp.eq.s32.totalorder %s26, 0
        // Predicated region
        $region37: #{tpu_custom_call.1} parent=27 // pred_check
          %p259 = pneg %p258
        $region38: #{tpu_custom_call.1} parent=27 // pred_check_branch
          %261 = sbr.rel (%p259) target = $region40
        $region39: #{tpu_custom_call.1} parent=27 // pred_region
          %262 = vst [vmem:[#allocation2] sm:$0xff] 0.0
          %263 = vst [vmem:[#allocation3] sm:$0xff] 0.0
        $region40: #{tpu_custom_call.1} parent=27 // pred_fallthru
          _
        %v264 = vld [vmem:[%s208] sm:$0xff]
        %v265 = vld [vmem:[%s217] sm:$0x3]
        %v266 = vlaneseq
        %v267 = vshrl.u32 %v266, 7
        %v268 = vlaneseq
        %v269 = vshrl.u32 %v268, 7
        %v270 = vsub.s32 0, %v269
        %v271 = vrot.slane %v265, %v270
        %v272 = vlaneseq
        %v273 = vshrl.u32 %v272, 7
        %v274 = vsub.s32 1, %v273
        %v275 = vrot.slane %v265, %v274
        %vm276 = vcmp.eq.s32.totalorder %v267, %v271
        %vm277 = vcmp.eq.s32.totalorder %v267, %v275
        %v278 = vld [vmem:[#allocation2] sm:$0xff]
        %v280 = vcombine.high %v264, %v264
        %v282 = vsel %vm276, %v264, 0.0
        %v283 = vsel %vm277, %v280, 0.0
        %v286 = vcombine.low %v282, %v283
        %v288 = vadd.f32 %v278, %v286
        %289 = vst [vmem:[#allocation2] sm:$0xff] %v288
        %v290 = vld [vmem:[#allocation3] sm:$0xff]
        %v291 = vmul.f32 %v264, %v264
        %v292 = vsel %vm276, 1, 0
        %v293 = vsel %vm277, 1, 0
        %v294 = vcvt.s32.f32 %v292
        %v295 = vcvt.s32.f32 %v293
        %v298 = vcombine.low %v294, %v295
        %v300 = vadd.f32 %v291, %v298
        %v301 = vadd.f32 %v290, %v300
        %302 = vst [vmem:[#allocation3] sm:$0xff] %v301
        // Predicated region
        $region41: #{tpu_custom_call.1} parent=27 // pred_check
          %p303 = pneg %p258
        $region42: #{tpu_custom_call.1} parent=27 // pred_check_branch
          %305 = sbr.rel (%p303) target = $region44
        $region43: #{tpu_custom_call.1} parent=27 // pred_region
          %v306 = vld [vmem:[#allocation2] sm:$0xff]
          %v308 = vcombine.high %v306, %v306
          %vm310 = vcmask 1043456
          %v311 = vsel %vm310, %v306, 0.0
          %v312 = vsel %vm310, %v308, 0.0
          %v313 = vadd.f32 %v311, %v312
          %314 = vadd.xlane.f32.xlu0 %v313
          %v315 = vpop.xlane.xlu0 %314
          %vm316 = vcmask 3072
          %317 = vst.msk [vmem:[%s253] sm:$0xf] %vm316, %v315
          %v318 = vld [vmem:[#allocation3] sm:$0xff]
          %v320 = vcombine.high %v318, %v318
          %v322 = vsel %vm310, %v318, 0.0
          %v323 = vsel %vm310, %v320, 0.0
          %v324 = vadd.f32 %v322, %v323
          %325 = vadd.xlane.f32.xlu0 %v324
          %v326 = vpop.xlane.xlu0 %325
          %327 = vst.msk [vmem:[%s257] sm:$0xf] %vm316, %v326
        $region44: #{tpu_custom_call.1} parent=27 // pred_fallthru
          _
        %p328 = scmp.lt.s32.totalorder %s25, 1
        %s329 = scalar_select %p328, %s25, 1
        %s330 = smul.addr %s329, 4
        %s331 = scalar_lea.vmem %s2, %s330
        %p332 = scmp.lt.s32.totalorder %s25, 1
        %s333 = scalar_select %p332, %s25, 1
        %s334 = smul.addr %s333, 4
        %s335 = scalar_lea.vmem %s3, %s334
        // Predicated region
        $region45: #{tpu_custom_call.1} parent=27 // pred_check
          %p336 = pneg %p107
        $region46: #{tpu_custom_call.1} parent=27 // pred_check_branch
          %338 = sbr.rel (%p336) target = $region48
        $region47: #{tpu_custom_call.1} parent=27 // pred_region
          _
        $region48: #{tpu_custom_call.1} parent=27 // pred_fallthru
          _
        // Predicated region
        $region49: #{tpu_custom_call.1} parent=27 // pred_check
          %p339 = pneg %p133
        $region50: #{tpu_custom_call.1} parent=27 // pred_check_branch
          %341 = sbr.rel (%p339) target = $region52
        $region51: #{tpu_custom_call.1} parent=27 // pred_region
          _
        $region52: #{tpu_custom_call.1} parent=27 // pred_fallthru
          _
      $region28: #{tpu_custom_call.1} parent=5 // pred_fallthru
        _
      %p342 = scmp.le.s32.totalorder 2, %s16
      // Predicated region
      $region53: #{tpu_custom_call.1} parent=5 // pred_check
        %p343 = pneg %p342
      $region54: #{tpu_custom_call.1} parent=5 // pred_check_branch
        %345 = sbr.rel (%p343) target = $region56
      $region55: #{tpu_custom_call.1} parent=5 // pred_region
        %s346 = ssub.s32 %s16, 2
        // Predicated region
        $region57: #{tpu_custom_call.1} parent=55 // pred_check
          %p347 = pneg %p113
        $region58: #{tpu_custom_call.1} parent=55 // pred_check_branch
          %349 = sbr.rel (%p347) target = $region60
        $region59: #{tpu_custom_call.1} parent=55 // pred_region
          %p350 = scmp.lt.s32.totalorder %s27, 1
          %s351 = scalar_select %p350, %s27, 1
          %s352 = smul.addr %s351, 4
          %s353 = scalar_lea.vmem %s2, %s352
        $region60: #{tpu_custom_call.1} parent=55 // pred_fallthru
          _
        // Predicated region
        $region61: #{tpu_custom_call.1} parent=55 // pred_check
          %p354 = pneg %p139
        $region62: #{tpu_custom_call.1} parent=55 // pred_check_branch
          %356 = sbr.rel (%p354) target = $region64
        $region63: #{tpu_custom_call.1} parent=55 // pred_region
          %p357 = scmp.lt.s32.totalorder %s27, 1
          %s358 = scalar_select %p357, %s27, 1
          %s359 = smul.addr %s358, 4
          %s360 = scalar_lea.vmem %s3, %s359
        $region64: #{tpu_custom_call.1} parent=55 // pred_fallthru
          _
      $region56: #{tpu_custom_call.1} parent=5 // pred_fallthru
        _
    $region6: #{tpu_custom_call.1} parent=1 // loop_footer
      %s20 = sadd.s32 1, %s16
    $region7: #{tpu_custom_call.1} parent=1 // loop_footer_branch
      %15 = sbr.rel target = $region3
    $region8: #{tpu_custom_call.1} parent=1 // loop_exit
      _
    %361 = vsyncpa [#allocation5], 1
    %s362 = scalar_lea.sflag [#allocation5], 1
    %363 = vsyncpa %s362, 1
    %364 = vsyncpa [#allocation7], 1
    %s365 = scalar_lea.sflag [#allocation7], 1
    %366 = vsyncpa %s365, 1

</llo_original>
